<compile_context>
chip_gen: v7x
topology: tpu7x:2x2x1
jax: 0.10.0
libtpu: 0.0.40
codegen_flags: <defaults>
</compile_context>

<pallas_src>
import functools
import math

import jax
import jax.numpy as jnp
from jax.experimental import pallas as pl
from jax.experimental.pallas import tpu as pltpu


# ----------------------------- per-chip tuning --------------------------------


def _chip_config():
    """Tile targets / VMEM scoped limit per TPU generation."""
    kind = ""
    try:
        kind = jax.devices()[0].device_kind.lower()
    except Exception:
        pass
    if "v5" in kind or "v6" in kind:
        # 128 MiB VMEM: big tiles, fewer grid steps, deep pipelining headroom.
        return dict(vmem_limit=100 * 2**20, seq=512, lane=1024,
                    attn_tq=256, attn_tkv=512, hidden=1024)
    # v7x (64 MiB VMEM) and conservative default for anything else.
    return dict(vmem_limit=48 * 2**20, seq=256, lane=512,
                attn_tq=256, attn_tkv=256, hidden=512)


# ----------------------------- helpers ---------------------------------------


def _seq_tile(s, target):
    """Largest divisor of s <= target that is a multiple of 32 (then 16, 8); else s."""
    if s <= target:
        return s
    for step in (32, 16, 8):
        t = (target // step) * step
        while t >= step:
            if s % t == 0:
                return t
            t -= step
    return s


def _lane_tile(n, target):
    """Largest multiple-of-128 divisor of n <= target; else n (full)."""
    if n <= target:
        return n
    t = (target // 128) * 128
    while t >= 128:
        if n % t == 0:
            return t
        t -= 128
    return n


def _head_group(num_head, head_dim):
    """Smallest divisor G of num_head with lane width G*head_dim a multiple of 128."""
    for g in range(1, num_head + 1):
        if num_head % g == 0 and (g * head_dim) % 128 == 0:
            return g
    return num_head                          # block then spans the full D (still dense)


def _layernorm(x, g, b, eps=1e-5):
    mu = jnp.mean(x, axis=-1, keepdims=True)
    var = jnp.mean(jnp.square(x - mu), axis=-1, keepdims=True)
    return (x - mu) * jax.lax.rsqrt(var + eps) * g + b


def _cparams(sems, cfg):
    return pltpu.CompilerParams(dimension_semantics=sems,
                                vmem_limit_bytes=cfg["vmem_limit"])


# ----------------------------- kernels ---------------------------------------


def qkv_kernel(x_ref, g_ref, b_ref, wqkv_ref, bqkv_ref, q_ref, k_ref, v_ref, *, d):
    """LN1 + one fused (D,3D) QKV projection for a (batch, seq-tile) grid point."""
    x = x_ref[0].astype(jnp.float32)                          # (TS, D)
    xn = _layernorm(x, g_ref[...], b_ref[...]).astype(jnp.bfloat16)
    qkv = jnp.dot(xn, wqkv_ref[...],
                  preferred_element_type=jnp.float32) + bqkv_ref[...]
    qkv = qkv.astype(jnp.bfloat16)                            # (TS, 3D)
    q_ref[0] = qkv[:, :d]
    k_ref[0] = qkv[:, d:2 * d]
    v_ref[0] = qkv[:, 2 * d:]


def attention_kernel(q_ref, k_ref, v_ref, o_ref, m_scr, l_scr, acc_scr,
                     *, scale, tq, tkv, gh, hd):
    """Flash-style causal attention for one (batch, head-group, q-tile, kv-tile).

    Q/K/V are sliced straight out of the (B, S, D) layout; heads within the
    group are statically unrolled 2-D MXU matmuls (no relayout); the HBM block
    written back is the lane-dense G*hd slice.
    """
    kj = pl.program_id(3)
    q_off = pl.program_id(2) * tq
    kv_off = kj * tkv

    @pl.when(kj == 0)
    def _():
        m_scr[...] = jnp.full(m_scr.shape, -jnp.inf, m_scr.dtype)
        l_scr[...] = jnp.zeros(l_scr.shape, l_scr.dtype)
        acc_scr[...] = jnp.zeros(acc_scr.shape, acc_scr.dtype)

    # Block-causal skip: KV tiles strictly above the diagonal contribute nothing.
    @pl.when(kv_off <= q_off + tq - 1)
    def _():
        row = jax.lax.broadcasted_iota(jnp.int32, (tq, tkv), 0) + q_off
        col = jax.lax.broadcasted_iota(jnp.int32, (tq, tkv), 1) + kv_off
        mask = col <= row
        for h in range(gh):                                   # statically unrolled
            sl = slice(h * hd, (h + 1) * hd)
            qh = q_ref[0, :, sl]                              # (TQ, hd) bf16
            kh = k_ref[0, :, sl]                              # (TKV, hd) bf16
            vh = v_ref[0, :, sl]                              # (TKV, hd) bf16
            s = jax.lax.dot_general(
                qh, kh, dimension_numbers=(((1,), (1,)), ((), ())),
                preferred_element_type=jnp.float32) * scale   # (TQ, TKV) f32
            s = jnp.where(mask, s, -1e30)
            m_prev = m_scr[h]                                 # (TQ, 1)
            m_new = jnp.maximum(m_prev, jnp.max(s, axis=-1, keepdims=True))
            alpha = jnp.exp(m_prev - m_new)
            p = jnp.exp(s - m_new)
            l_scr[h] = alpha * l_scr[h] + jnp.sum(p, axis=-1, keepdims=True)
            acc_scr[h] = alpha * acc_scr[h] + jnp.dot(
                p.astype(jnp.bfloat16), vh, preferred_element_type=jnp.float32)
            m_scr[h] = m_new

    @pl.when(kj == pl.num_programs(3) - 1)
    def _():
        for h in range(gh):
            sl = slice(h * hd, (h + 1) * hd)
            inv = pl.reciprocal(l_scr[h], approx=True)        # EUP, not VALU divide
            o_ref[0, :, sl] = (acc_scr[h] * inv).astype(o_ref.dtype)


def proj_ffn_kernel(x_ref, attn_ref, wo_ref, bo_ref, g2_ref, b2_ref,
                    w1_ref, b1_ref, w2_ref, bff2_ref, o_ref,
                    x1_scr, xn2_scr, acc_scr):
    """attn @ Wo + residual, then LN2 + FFN (hidden dim tiled as reduction axis)."""
    j = pl.program_id(2)

    @pl.when(j == 0)
    def _():
        x = x_ref[0].astype(jnp.float32)                      # (TS, D)
        a = attn_ref[0]                                       # (TS, D) bf16
        attn_out = jnp.dot(a, wo_ref[...],
                           preferred_element_type=jnp.float32) + bo_ref[...]
        x1 = x + attn_out                                     # f32 residual
        x1_scr[...] = x1
        xn2_scr[...] = _layernorm(x1, g2_ref[...], b2_ref[...]).astype(jnp.bfloat16)
        acc_scr[...] = jnp.zeros(acc_scr.shape, acc_scr.dtype)

    h = jnp.dot(xn2_scr[...], w1_ref[...],
                preferred_element_type=jnp.float32) + b1_ref[...]
    h = jnp.maximum(h, 0.0).astype(jnp.bfloat16)              # ReLU
    acc_scr[...] += jnp.dot(h, w2_ref[...], preferred_element_type=jnp.float32)

    @pl.when(j == pl.num_programs(2) - 1)
    def _():
        o_ref[0] = (x1_scr[...] + acc_scr[...] + bff2_ref[...]).astype(o_ref.dtype)


def output_linear_kernel(x_ref, w_ref, b_ref, o_ref):
    """Vocab projection for one (batch, seq-tile, vocab-tile); x already bf16."""
    o_ref[0] = jnp.dot(x_ref[0], w_ref[...],
                       preferred_element_type=jnp.float32) + b_ref[...]


# ----------------------------- wrappers ---------------------------------------


def qkv_projection(x, p, cfg):
    B, S, D = x.shape
    ts = _seq_tile(S, cfg["seq"])
    grid = (B, S // ts)

    act = pl.BlockSpec((1, ts, D), lambda b, i: (b, i, 0))
    vecD = pl.BlockSpec((1, D), lambda b, i: (0, 0))
    w_spec = pl.BlockSpec((D, 3 * D), lambda b, i: (0, 0))
    vec3D = pl.BlockSpec((1, 3 * D), lambda b, i: (0, 0))

    ce = pl.CostEstimate(
        flops=int(6 * B * S * D * D),
        transcendentals=int(B * S),
        bytes_accessed=int(2 * B * S * D + 2 * 3 * D * D + 3 * 2 * B * S * D),
    )
    out_sd = jax.ShapeDtypeStruct((B, S, D), jnp.bfloat16)
    return pl.pallas_call(
        functools.partial(qkv_kernel, d=D),
        out_shape=(out_sd, out_sd, out_sd),
        grid=grid,
        in_specs=[act, vecD, vecD, w_spec, vec3D],
        out_specs=(act, act, act),
        compiler_params=_cparams(("parallel", "parallel"), cfg),
        cost_estimate=ce,
    )(x, p["ln1_g"], p["ln1_b"], p["wqkv"], p["bqkv"])


def attention(q, k, v, num_head, cfg):
    B, S, D = q.shape
    hd = D // num_head
    G = _head_group(num_head, hd)
    gw = G * hd
    tq = _seq_tile(S, cfg["attn_tq"])
    tkv = _seq_tile(S, cfg["attn_tkv"])
    grid = (B, num_head // G, S // tq, S // tkv)

    kernel = functools.partial(attention_kernel, scale=1.0 / math.sqrt(hd),
                               tq=tq, tkv=tkv, gh=G, hd=hd)

    q_spec = pl.BlockSpec((1, tq, gw), lambda b, g, i, j: (b, i, g))
    kv_spec = pl.BlockSpec((1, tkv, gw), lambda b, g, i, j: (b, j, g))

    ce = pl.CostEstimate(
        flops=int(2 * B * num_head * S * S * hd),             # ~causal half
        transcendentals=int(B * num_head * S * S // 2),
        bytes_accessed=int(4 * B * S * D + 4 * B * S * D * max(1, S // tq)),
    )
    return pl.pallas_call(
        kernel,
        out_shape=jax.ShapeDtypeStruct((B, S, D), jnp.bfloat16),
        grid=grid,
        in_specs=[q_spec, kv_spec, kv_spec],
        out_specs=q_spec,
        scratch_shapes=[pltpu.VMEM((G, tq, 1), jnp.float32),   # running max
                        pltpu.VMEM((G, tq, 1), jnp.float32),   # running denom
                        pltpu.VMEM((G, tq, hd), jnp.float32)], # output accumulator
        compiler_params=_cparams(
            ("parallel", "parallel", "arbitrary", "arbitrary"), cfg),
        cost_estimate=ce,
    )(q, k, v)


def proj_ffn(x, attn, p, cfg):
    B, S, D = x.shape
    Dh = p["w1"].shape[1]
    ts = _seq_tile(S, cfg["seq"])
    th = _lane_tile(Dh, cfg["hidden"])
    grid = (B, S // ts, Dh // th)

    act = pl.BlockSpec((1, ts, D), lambda b, i, j: (b, i, 0))
    vecD = pl.BlockSpec((1, D), lambda b, i, j: (0, 0))

    ce = pl.CostEstimate(
        flops=int(2 * B * S * D * D + 4 * B * S * D * Dh),
        transcendentals=int(B * S),
        bytes_accessed=int(2 * (D * D + 2 * D * Dh) + 3 * 2 * B * S * D),
    )
    return pl.pallas_call(
        proj_ffn_kernel,
        out_shape=jax.ShapeDtypeStruct((B, S, D), jnp.bfloat16),
        grid=grid,
        in_specs=[
            act,                                               # x (bf16 residual)
            act,                                               # attn (bf16)
            pl.BlockSpec((D, D), lambda b, i, j: (0, 0)),      # wo
            vecD,                                              # bo
            vecD, vecD,                                        # ln2 g, b
            pl.BlockSpec((D, th), lambda b, i, j: (0, j)),     # w1 (hidden-tiled)
            pl.BlockSpec((1, th), lambda b, i, j: (0, j)),     # b1
            pl.BlockSpec((th, D), lambda b, i, j: (j, 0)),     # w2 (hidden-tiled)
            vecD,                                              # b2
        ],
        out_specs=act,
        scratch_shapes=[pltpu.VMEM((ts, D), jnp.float32),      # x1 residual (f32)
                        pltpu.VMEM((ts, D), jnp.bfloat16),     # LN2(x1) (bf16)
                        pltpu.VMEM((ts, D), jnp.float32)],     # FFN accumulator
        compiler_params=_cparams(("parallel", "parallel", "arbitrary"), cfg),
        cost_estimate=ce,
    )(x, attn, p["wo"], p["bo"], p["ln2_g"], p["ln2_b"],
      p["w1"], p["b1"], p["w2"], p["b2"])


def transformer_block(x, p, num_head, cfg):
    q, k, v = qkv_projection(x, p, cfg)
    attn = attention(q, k, v, num_head, cfg)   # stays in (B,S,D): no XLA head relayout
    return proj_ffn(x, attn, p, cfg)


def output_linear(x, w, b, cfg):
    B, S, D = x.shape
    V = w.shape[1]
    ts = _seq_tile(S, cfg["seq"])
    tv = _lane_tile(V, cfg["lane"])
    grid = (B, S // ts, V // tv)

    ce = pl.CostEstimate(
        flops=int(2 * B * S * D * V),
        transcendentals=0,
        bytes_accessed=int(2 * B * S * D + 2 * D * V + 4 * B * S * V),
    )
    return pl.pallas_call(
        output_linear_kernel,
        out_shape=jax.ShapeDtypeStruct((B, S, V), jnp.float32),
        grid=grid,
        in_specs=[
            pl.BlockSpec((1, ts, D), lambda b, i, j: (b, i, 0)),
            pl.BlockSpec((D, tv), lambda b, i, j: (0, j)),
            pl.BlockSpec((1, tv), lambda b, i, j: (0, j)),
        ],
        out_specs=pl.BlockSpec((1, ts, tv), lambda b, i, j: (b, i, j)),
        compiler_params=_cparams(("parallel", "parallel", "arbitrary"), cfg),
        cost_estimate=ce,
    )(x, w, b)


def transformer_forward(tokens, params, cfg=None):
    """tokens: (B, S) int32 -> logits (B, S, vocab_length) float32."""
    if cfg is None:
        cfg = _chip_config()
    B, S = tokens.shape
    # Embedding lookups are gathers (glue) — done in plain JAX.
    x = jnp.take(params["tok_emb"], tokens, axis=0) + params["pos_emb"][:S][None, :, :]
    x = x.astype(jnp.bfloat16)                 # bf16 residual stream in HBM
    for blk in params["blocks"]:
        x = transformer_block(x, blk, params["num_head"], cfg)
    return output_linear(x, params["w_out"], params["b_out"], cfg)


# --------------------------- parameter init ------------------------------------


def init_params(key, embed_dim, num_head, vocab_length, context_length, n_blocks=3):
    keys = iter(jax.random.split(key, 64))

    def nrm(shape, scale=0.02, dtype=jnp.float32):
        return (scale * jax.random.normal(next(keys), shape)).astype(dtype)

    bf16 = jnp.bfloat16
    params = {
        "num_head": num_head,
        "tok_emb": nrm((vocab_length, embed_dim)),
        "pos_emb": nrm((context_length, embed_dim)),
        "w_out": nrm((embed_dim, vocab_length), dtype=bf16),
        "b_out": jnp.zeros((1, vocab_length), jnp.float32),
        "blocks": [],
    }
    hidden = 4 * embed_dim
    for _ in range(n_blocks):
        params["blocks"].append({
            "ln1_g": jnp.ones((1, embed_dim), jnp.float32),
            "ln1_b": jnp.zeros((1, embed_dim), jnp.float32),
            # Fused Q/K/V projection weight (D, 3D): one wide MXU matmul.
            "wqkv": nrm((embed_dim, 3 * embed_dim), dtype=bf16),
            "bqkv": jnp.zeros((1, 3 * embed_dim), jnp.float32),
            "wo": nrm((embed_dim, embed_dim), dtype=bf16),
            "bo": jnp.zeros((1, embed_dim), jnp.float32),
            "ln2_g": jnp.ones((1, embed_dim), jnp.float32),
            "ln2_b": jnp.zeros((1, embed_dim), jnp.float32),
            "w1": nrm((embed_dim, hidden), dtype=bf16),
            "b1": jnp.zeros((1, hidden), jnp.float32),
            "w2": nrm((hidden, embed_dim), dtype=bf16),
            "b2": jnp.zeros((1, embed_dim), jnp.float32),
        })
    return params


# ------------------------------- main ------------------------------------------

if __name__ == "__main__":
    embed_dim = 32
    num_head = 4
    vocab_length = 64
    context_length = 16
    batch, seq = 2, 8

    key = jax.random.PRNGKey(0)
    k_params, k_tok = jax.random.split(key)
    params = init_params(k_params, embed_dim, num_head, vocab_length, context_length)
    tokens = jax.random.randint(k_tok, (batch, seq), 0, vocab_length, dtype=jnp.int32)

    logits = transformer_forward(tokens, params)
    jax.block_until_ready(logits)
    assert logits.shape == (batch, seq, vocab_length)
    assert logits.dtype == jnp.float32
    assert bool(jnp.all(jnp.isfinite(logits)))
    print("KERNEL_OK")
</pallas_src>

<mosaic_0001>
module attributes {stable_mosaic.version = 11 : i64} {
  func.func @qkv_kernel(%arg0: i32, %arg1: i32, %arg2: memref<1x8x32xbf16, #tpu.memory_space<vmem>>, %arg3: memref<1x32xf32, #tpu.memory_space<vmem>>, %arg4: memref<1x32xf32, #tpu.memory_space<vmem>>, %arg5: memref<32x96xbf16, #tpu.memory_space<vmem>>, %arg6: memref<1x96xf32, #tpu.memory_space<vmem>>, %arg7: memref<1x8x32xbf16, #tpu.memory_space<vmem>>, %arg8: memref<1x8x32xbf16, #tpu.memory_space<vmem>>, %arg9: memref<1x8x32xbf16, #tpu.memory_space<vmem>>) attributes {dimension_semantics = [#tpu.dimension_semantics<parallel>, #tpu.dimension_semantics<parallel>], iteration_bounds = array<i64: 2, 1>, scalar_prefetch = 0 : i64, scratch_operands = 0 : i64, tpu.core_type = #tpu.core_type<tc>, window_params = [{transform_indices = @transform_0, window_bounds = array<i64: 1, 8, 32>}, {pipeline_mode = #tpu.pipeline_mode<synchronous>, transform_indices = @transform_1, window_bounds = array<i64: 1, 32>}, {pipeline_mode = #tpu.pipeline_mode<synchronous>, transform_indices = @transform_2, window_bounds = array<i64: 1, 32>}, {pipeline_mode = #tpu.pipeline_mode<synchronous>, transform_indices = @transform_3, window_bounds = array<i64: 32, 96>}, {pipeline_mode = #tpu.pipeline_mode<synchronous>, transform_indices = @transform_4, window_bounds = array<i64: 1, 96>}, {transform_indices = @transform_5, window_bounds = array<i64: 1, 8, 32>}, {transform_indices = @transform_6, window_bounds = array<i64: 1, 8, 32>}, {transform_indices = @transform_7, window_bounds = array<i64: 1, 8, 32>}]} {
    %c0 = arith.constant 0 : index
    %c0_0 = arith.constant 0 : index
    %c0_1 = arith.constant 0 : index
    %0 = vector.load %arg2[%c0, %c0_0, %c0_1] : memref<1x8x32xbf16, #tpu.memory_space<vmem>>, vector<1x8x32xbf16>
    %1 = vector.shape_cast %0 : vector<1x8x32xbf16> to vector<8x32xbf16>
    %2 = arith.extf %1 : vector<8x32xbf16> to vector<8x32xf32>
    %c0_2 = arith.constant 0 : index
    %c0_3 = arith.constant 0 : index
    %3 = vector.load %arg3[%c0_2, %c0_3] : memref<1x32xf32, #tpu.memory_space<vmem>>, vector<1x32xf32>
    %c0_4 = arith.constant 0 : index
    %c0_5 = arith.constant 0 : index
    %4 = vector.load %arg4[%c0_4, %c0_5] : memref<1x32xf32, #tpu.memory_space<vmem>>, vector<1x32xf32>
    %cst = arith.constant dense<0.000000e+00> : vector<8xf32>
    %5 = vector.multi_reduction <add>, %2, %cst [1] : vector<8x32xf32> to vector<8xf32>
    %6 = vector.shape_cast %5 : vector<8xf32> to vector<8x1xf32>
    %cst_6 = arith.constant 3.200000e+01 : f32
    %7 = vector.broadcast %cst_6 : f32 to vector<8x1xf32>
    %8 = arith.divf %6, %7 : vector<8x1xf32>
    %9 = vector.broadcast %8 : vector<8x1xf32> to vector<8x32xf32>
    %10 = arith.subf %2, %9 : vector<8x32xf32>
    %11 = arith.mulf %10, %10 : vector<8x32xf32>
    %cst_7 = arith.constant dense<0.000000e+00> : vector<8xf32>
    %12 = vector.multi_reduction <add>, %11, %cst_7 [1] : vector<8x32xf32> to vector<8xf32>
    %13 = vector.shape_cast %12 : vector<8xf32> to vector<8x1xf32>
    %cst_8 = arith.constant 3.200000e+01 : f32
    %14 = vector.broadcast %cst_8 : f32 to vector<8x1xf32>
    %15 = arith.divf %13, %14 : vector<8x1xf32>
    %16 = vector.broadcast %8 : vector<8x1xf32> to vector<8x32xf32>
    %17 = arith.subf %2, %16 : vector<8x32xf32>
    %cst_9 = arith.constant 9.99999974E-6 : f32
    %18 = vector.broadcast %cst_9 : f32 to vector<8x1xf32>
    %19 = arith.addf %15, %18 : vector<8x1xf32>
    %20 = math.rsqrt %19 : vector<8x1xf32>
    %21 = vector.broadcast %20 : vector<8x1xf32> to vector<8x32xf32>
    %22 = arith.mulf %17, %21 : vector<8x32xf32>
    %23 = vector.broadcast %3 : vector<1x32xf32> to vector<8x32xf32>
    %24 = arith.mulf %22, %23 : vector<8x32xf32>
    %25 = vector.broadcast %4 : vector<1x32xf32> to vector<8x32xf32>
    %26 = arith.addf %24, %25 : vector<8x32xf32>
    %27 = arith.truncf %26 : vector<8x32xf32> to vector<8x32xbf16>
    %c0_10 = arith.constant 0 : index
    %c0_11 = arith.constant 0 : index
    %28 = vector.load %arg5[%c0_10, %c0_11] : memref<32x96xbf16, #tpu.memory_space<vmem>>, vector<32x96xbf16>
    %cst_12 = arith.constant dense<0.000000e+00> : vector<8x96xf32>
    %29 = tpu.matmul %27, %28, %cst_12 {dimension_numbers = #tpu.dot_dimension_numbers<[1], [0], [0], [1], [0, 0, 1, 1], [], []>} : vector<8x32xbf16>, vector<32x96xbf16>, vector<8x96xf32> -> vector<8x96xf32>
    %c0_13 = arith.constant 0 : index
    %c0_14 = arith.constant 0 : index
    %30 = vector.load %arg6[%c0_13, %c0_14] : memref<1x96xf32, #tpu.memory_space<vmem>>, vector<1x96xf32>
    %31 = vector.broadcast %30 : vector<1x96xf32> to vector<8x96xf32>
    %32 = arith.addf %29, %31 : vector<8x96xf32>
    %33 = arith.truncf %32 : vector<8x96xf32> to vector<8x96xbf16>
    %34 = vector.extract_strided_slice %33 {offsets = [0, 0], sizes = [8, 32], strides = [1, 1]} : vector<8x96xbf16> to vector<8x32xbf16>
    %c0_15 = arith.constant 0 : index
    %c0_16 = arith.constant 0 : index
    %c0_17 = arith.constant 0 : index
    %35 = vector.load %arg7[%c0_15, %c0_16, %c0_17] : memref<1x8x32xbf16, #tpu.memory_space<vmem>>, vector<1x8x32xbf16>
    %36 = vector.shape_cast %35 : vector<1x8x32xbf16> to vector<8x32xbf16>
    %37 = vector.shape_cast %34 : vector<8x32xbf16> to vector<1x8x32xbf16>
    tpu.vector_store %arg7[%c0_15, %c0_16, %c0_17], %37 {strides = array<i32>} : memref<1x8x32xbf16, #tpu.memory_space<vmem>>, vector<1x8x32xbf16>,
    %38 = vector.extract_strided_slice %33 {offsets = [0, 32], sizes = [8, 32], strides = [1, 1]} : vector<8x96xbf16> to vector<8x32xbf16>
    %c0_18 = arith.constant 0 : index
    %c0_19 = arith.constant 0 : index
    %c0_20 = arith.constant 0 : index
    %39 = vector.load %arg8[%c0_18, %c0_19, %c0_20] : memref<1x8x32xbf16, #tpu.memory_space<vmem>>, vector<1x8x32xbf16>
    %40 = vector.shape_cast %39 : vector<1x8x32xbf16> to vector<8x32xbf16>
    %41 = vector.shape_cast %38 : vector<8x32xbf16> to vector<1x8x32xbf16>
    tpu.vector_store %arg8[%c0_18, %c0_19, %c0_20], %41 {strides = array<i32>} : memref<1x8x32xbf16, #tpu.memory_space<vmem>>, vector<1x8x32xbf16>,
    %42 = vector.extract_strided_slice %33 {offsets = [0, 64], sizes = [8, 32], strides = [1, 1]} : vector<8x96xbf16> to vector<8x32xbf16>
    %c0_21 = arith.constant 0 : index
    %c0_22 = arith.constant 0 : index
    %c0_23 = arith.constant 0 : index
    %43 = vector.load %arg9[%c0_21, %c0_22, %c0_23] : memref<1x8x32xbf16, #tpu.memory_space<vmem>>, vector<1x8x32xbf16>
    %44 = vector.shape_cast %43 : vector<1x8x32xbf16> to vector<8x32xbf16>
    %45 = vector.shape_cast %42 : vector<8x32xbf16> to vector<1x8x32xbf16>
    tpu.vector_store %arg9[%c0_21, %c0_22, %c0_23], %45 {strides = array<i32>} : memref<1x8x32xbf16, #tpu.memory_space<vmem>>, vector<1x8x32xbf16>,
    return
  }
  func.func @transform_0(%arg0: i32, %arg1: i32) -> (i32, i32, i32) {
    %c0_i32 = arith.constant 0 : i32
    %c0_i32_0 = arith.constant 0 : i32
    return %arg0, %arg1, %c0_i32 : i32, i32, i32
  }
  func.func @transform_1(%arg0: i32, %arg1: i32) -> (i32, i32) {
    %c0_i32 = arith.constant 0 : i32
    %c0_i32_0 = arith.constant 0 : i32
    %c0_i32_1 = arith.constant 0 : i32
    return %c0_i32, %c0_i32_0 : i32, i32
  }
  func.func @transform_2(%arg0: i32, %arg1: i32) -> (i32, i32) {
    %c0_i32 = arith.constant 0 : i32
    %c0_i32_0 = arith.constant 0 : i32
    %c0_i32_1 = arith.constant 0 : i32
    return %c0_i32, %c0_i32_0 : i32, i32
  }
  func.func @transform_3(%arg0: i32, %arg1: i32) -> (i32, i32) {
    %c0_i32 = arith.constant 0 : i32
    %c0_i32_0 = arith.constant 0 : i32
    %c0_i32_1 = arith.constant 0 : i32
    return %c0_i32, %c0_i32_0 : i32, i32
  }
  func.func @transform_4(%arg0: i32, %arg1: i32) -> (i32, i32) {
    %c0_i32 = arith.constant 0 : i32
    %c0_i32_0 = arith.constant 0 : i32
    %c0_i32_1 = arith.constant 0 : i32
    return %c0_i32, %c0_i32_0 : i32, i32
  }
  func.func @transform_5(%arg0: i32, %arg1: i32) -> (i32, i32, i32) {
    %c0_i32 = arith.constant 0 : i32
    %c0_i32_0 = arith.constant 0 : i32
    return %arg0, %arg1, %c0_i32 : i32, i32, i32
  }
  func.func @transform_6(%arg0: i32, %arg1: i32) -> (i32, i32, i32) {
    %c0_i32 = arith.constant 0 : i32
    %c0_i32_0 = arith.constant 0 : i32
    return %arg0, %arg1, %c0_i32 : i32, i32, i32
  }
  func.func @transform_7(%arg0: i32, %arg1: i32) -> (i32, i32, i32) {
    %c0_i32 = arith.constant 0 : i32
    %c0_i32_0 = arith.constant 0 : i32
    return %arg0, %arg1, %c0_i32 : i32, i32, i32
  }
}

</mosaic_0001>

<llo_original>
// kernel: tpu_custom_call.1
$region0: #{tpu_custom_call.1}
  #allocation0 [shape = 'u32[]', space=smem, size = 0x4, offset = 0x4, fixed_abs, tag = 'smem constant byte address 0x4 - core index']
  #allocation1 [shape = 'u32[144,128]{1,0:T(1,128)}', space=vmem, size = 0x12000, scoped, tag = 'internal scratch']
  %s0 = inlined_call_operand.hbm [shape: bf16[2,8,32], index: 0, kind: input, shape index: {}]
  %s1 = inlined_call_operand.vmem [shape: f32[1,32], index: 1, kind: input, shape index: {}]
  %s2 = inlined_call_operand.vmem [shape: f32[1,32], index: 2, kind: input, shape index: {}]
  %s3 = inlined_call_operand.hbm [shape: bf16[32,96], index: 3, kind: input, shape index: {}]
  %s4 = inlined_call_operand.vmem [shape: f32[1,96], index: 4, kind: input, shape index: {}]
  %s5 = inlined_call_operand.hbm [shape: bf16[2,8,32], index: 5, kind: output, shape index: {0}]
  %s6 = inlined_call_operand.hbm [shape: bf16[2,8,32], index: 6, kind: output, shape index: {1}]
  %s7 = inlined_call_operand.hbm [shape: bf16[2,8,32], index: 7, kind: output, shape index: {2}]
  %8 = xla_tuple %s5, %s6, %s7
  %s9 = sld [smem:[#allocation0]]
  $region77: #{tpu_custom_call.1} parent=0
    _
  %s11 = ssub.s32 1, %s9
  %s12 = scalar_select 0, %s11, %s9
  $region1: #{tpu_custom_call.1} parent=0
    #allocation2 [shape = 'u8[4096]{0}', space=vmem, size = 0x1000, scoped, tag = 'input window, operand 0']
    #allocation3 [shape = 's32[2]{0}', space=sflag, size = 0x8, scoped, tag = 'scoped memory for tpu_custom_call.1']
    #allocation4 [shape = 's32[2]{0}', space=sflag, size = 0x8, scoped, tag = 'scoped memory for tpu_custom_call.1']
    #allocation5 [shape = 'u8[8192]{0}', space=vmem, size = 0x2000, scoped, tag = 'input window, operand 3, single buffered']
    #allocation6 [shape = 's32[1]{0}', space=sflag, size = 0x4, scoped, tag = 'scoped memory for tpu_custom_call.1']
    #allocation7 [shape = 'u8[4096]{0}', space=vmem, size = 0x1000, scoped, tag = 'output window, operand 0']
    #allocation8 [shape = 'u8[4096]{0}', space=vmem, size = 0x1000, scoped, tag = 'output window, operand 1']
    #allocation9 [shape = 's32[2]{0}', space=sflag, size = 0x8, scoped, tag = 'scoped memory for tpu_custom_call.1']
    #allocation10 [shape = 'u8[4096]{0}', space=vmem, size = 0x1000, scoped, tag = 'output window, operand 2']
    %13 = vsyncpa [#allocation3], 0
    %s14 = scalar_lea.sflag [#allocation3], 1
    %15 = vsyncpa %s14, 0
    %16 = vsyncpa [#allocation6], 0
    %17 = vsyncpa [#allocation4], 0
    %s18 = scalar_lea.sflag [#allocation4], 1
    %19 = vsyncpa %s18, 0
    %20 = vsyncpa [#allocation9], 0
    %s21 = scalar_lea.sflag [#allocation9], 1
    %22 = vsyncpa %s21, 0
    loop: start=0, step=1, limit=4
    $region2: #{tpu_custom_call.1} parent=1 // loop_pre_header
      _
    $region3: #{tpu_custom_call.1} parent=1 // loop_header
      %s24 = sphi 0, %s28
      %p25 = scmp.ge.s32.totalorder %s24, 4
      %s31 = sphi 0, %s43
      %s32 = sphi 0, %s39
      %s33 = sphi 0, %s31
      %s34 = sphi 0, %s32
      %s35 = sphi 0, %s33
      %s36 = sphi 0, %s34
      %s48 = sphi 0, %s50
      %s51 = sphi 0, %s48
      %s52 = sphi 0, %s51
      %s68 = sphi 0, %s52
      %s72 = sphi 0, %s72
      %s74 = sphi 0, %s72
      %s75 = sphi 0, %s74
      %s89 = sphi 0, %s75
      %s93 = sphi 0, %s93
      %s95 = sphi 0, %s93
      %s96 = sphi 0, %s95
      %s110 = sphi 0, %s96
      %s114 = sphi 0, %s114
      %s116 = sphi 0, %s114
      %s117 = sphi 0, %s116
      %s131 = sphi 0, %s117
      %s135 = sphi 0, %s135
      %s137 = sphi 0, %s135
      %s138 = sphi 0, %s137
      %s152 = sphi 0, %s138
      %s160 = sphi 0, %s162
      %s163 = sphi 0, %s160
      %s164 = sphi 0, %s163
      %s180 = sphi 0, %s164
      %s188 = sphi 0, %s190
      %s191 = sphi 0, %s188
      %s192 = sphi 0, %s191
      %s208 = sphi 0, %s192
      %s216 = sphi 0, %s218
      %s219 = sphi 0, %s216
      %s220 = sphi 0, %s219
      %s236 = sphi 0, %s220
    $region4: #{tpu_custom_call.1} parent=1 // loop_header_branch
      %27 = sbr.rel (%p25) target = $region8
    $region5: #{tpu_custom_call.1} parent=1 // loop_body
      %s29 = ssub.s32 %s24, 1
      %s30 = ssub.s32 %s24, 2
      %s37 = sadd.s32 1, %s32
      %p38 = scmp.ge.s32.totalorder %s37, 1
      %s39 = scalar_select %p38, 0, %s37
      %s40 = sadd.s32 1, %s31
      %s41 = scalar_select %p38, %s40, %s31
      %p42 = scmp.ge.s32.totalorder %s41, 2
      %s43 = scalar_select %p42, 0, %s41
      %s44 = ssub.s32 %s31, %s43
      %s45 = ssub.s32 %s32, %s39
      %s46 = sor.u32 %s44, %s45
      %p47 = scmp.eq.s32.totalorder %s46, 0
      %s49 = sadd.s32 %s48, 1
      %s50 = scalar_select %p47, %s48, %s49
      %p53 = pneg %p47
      %p54 = scmp.eq.s32.totalorder %s24, 1
      %p55 = por %p53, %p54
      %p56 = scmp.ne.s32.totalorder %s48, %s51
      %p57 = scmp.eq.s32.totalorder %s24, 0
      %p58 = por %p56, %p57
      %p59 = scmp.ne.s32.totalorder %s48, %s51
      %p60 = scmp.eq.s32.totalorder %s29, 1
      %p61 = por %p59, %p60
      %p62 = scmp.ne.s32.totalorder %s51, %s52
      %p63 = scmp.eq.s32.totalorder %s29, 0
      %p64 = por %p62, %p63
      %p65 = scmp.ne.s32.totalorder %s51, %s52
      %p66 = scmp.eq.s32.totalorder %s30, 1
      %p67 = por %p65, %p66
      %p69 = scmp.ne.s32.totalorder %s52, %s68
      %p70 = scmp.eq.s32.totalorder %s30, 0
      %p71 = por %p69, %p70
      %s73 = sadd.s32 %s72, 1
      %p76 = scmp.eq.s32.totalorder %s24, 1
      %p77 = scmp.ne.s32.totalorder %s72, %s74
      %p78 = scmp.eq.s32.totalorder %s24, 0
      %p79 = por %p77, %p78
      %p80 = scmp.ne.s32.totalorder %s72, %s74
      %p81 = scmp.eq.s32.totalorder %s29, 1
      %p82 = por %p80, %p81
      %p83 = scmp.ne.s32.totalorder %s74, %s75
      %p84 = scmp.eq.s32.totalorder %s29, 0
      %p85 = por %p83, %p84
      %p86 = scmp.ne.s32.totalorder %s74, %s75
      %p87 = scmp.eq.s32.totalorder %s30, 1
      %p88 = por %p86, %p87
      %p90 = scmp.ne.s32.totalorder %s75, %s89
      %p91 = scmp.eq.s32.totalorder %s30, 0
      %p92 = por %p90, %p91
      %s94 = sadd.s32 %s93, 1
      %p97 = scmp.eq.s32.totalorder %s24, 1
      %p98 = scmp.ne.s32.totalorder %s93, %s95
      %p99 = scmp.eq.s32.totalorder %s24, 0
      %p100 = por %p98, %p99
      %p101 = scmp.ne.s32.totalorder %s93, %s95
      %p102 = scmp.eq.s32.totalorder %s29, 1
      %p103 = por %p101, %p102
      %p104 = scmp.ne.s32.totalorder %s95, %s96
      %p105 = scmp.eq.s32.totalorder %s29, 0
      %p106 = por %p104, %p105
      %p107 = scmp.ne.s32.totalorder %s95, %s96
      %p108 = scmp.eq.s32.totalorder %s30, 1
      %p109 = por %p107, %p108
      %p111 = scmp.ne.s32.totalorder %s96, %s110
      %p112 = scmp.eq.s32.totalorder %s30, 0
      %p113 = por %p111, %p112
      %s115 = sadd.s32 %s114, 1
      %p118 = scmp.eq.s32.totalorder %s24, 1
      %p119 = scmp.ne.s32.totalorder %s114, %s116
      %p120 = scmp.eq.s32.totalorder %s24, 0
      %p121 = por %p119, %p120
      %p122 = scmp.ne.s32.totalorder %s114, %s116
      %p123 = scmp.eq.s32.totalorder %s29, 1
      %p124 = por %p122, %p123
      %p125 = scmp.ne.s32.totalorder %s116, %s117
      %p126 = scmp.eq.s32.totalorder %s29, 0
      %p127 = por %p125, %p126
      %p128 = scmp.ne.s32.totalorder %s116, %s117
      %p129 = scmp.eq.s32.totalorder %s30, 1
      %p130 = por %p128, %p129
      %p132 = scmp.ne.s32.totalorder %s117, %s131
      %p133 = scmp.eq.s32.totalorder %s30, 0
      %p134 = por %p132, %p133
      %s136 = sadd.s32 %s135, 1
      %p139 = scmp.eq.s32.totalorder %s24, 1
      %p140 = scmp.ne.s32.totalorder %s135, %s137
      %p141 = scmp.eq.s32.totalorder %s24, 0
      %p142 = por %p140, %p141
      %p143 = scmp.ne.s32.totalorder %s135, %s137
      %p144 = scmp.eq.s32.totalorder %s29, 1
      %p145 = por %p143, %p144
      %p146 = scmp.ne.s32.totalorder %s137, %s138
      %p147 = scmp.eq.s32.totalorder %s29, 0
      %p148 = por %p146, %p147
      %p149 = scmp.ne.s32.totalorder %s137, %s138
      %p150 = scmp.eq.s32.totalorder %s30, 1
      %p151 = por %p149, %p150
      %p153 = scmp.ne.s32.totalorder %s138, %s152
      %p154 = scmp.eq.s32.totalorder %s30, 0
      %p155 = por %p153, %p154
      %s156 = ssub.s32 %s31, %s43
      %s157 = ssub.s32 %s32, %s39
      %s158 = sor.u32 %s156, %s157
      %p159 = scmp.eq.s32.totalorder %s158, 0
      %s161 = sadd.s32 %s160, 1
      %s162 = scalar_select %p159, %s160, %s161
      %p165 = pneg %p159
      %p166 = scmp.eq.s32.totalorder %s24, 1
      %p167 = por %p165, %p166
      %p168 = scmp.ne.s32.totalorder %s160, %s163
      %p169 = scmp.eq.s32.totalorder %s24, 0
      %p170 = por %p168, %p169
      %p171 = scmp.ne.s32.totalorder %s160, %s163
      %p172 = scmp.eq.s32.totalorder %s29, 1
      %p173 = por %p171, %p172
      %p174 = scmp.ne.s32.totalorder %s163, %s164
      %p175 = scmp.eq.s32.totalorder %s29, 0
      %p176 = por %p174, %p175
      %p177 = scmp.ne.s32.totalorder %s163, %s164
      %p178 = scmp.eq.s32.totalorder %s30, 1
      %p179 = por %p177, %p178
      %p181 = scmp.ne.s32.totalorder %s164, %s180
      %p182 = scmp.eq.s32.totalorder %s30, 0
      %p183 = por %p181, %p182
      %s184 = ssub.s32 %s31, %s43
      %s185 = ssub.s32 %s32, %s39
      %s186 = sor.u32 %s184, %s185
      %p187 = scmp.eq.s32.totalorder %s186, 0
      %s189 = sadd.s32 %s188, 1
      %s190 = scalar_select %p187, %s188, %s189
      %p193 = pneg %p187
      %p194 = scmp.eq.s32.totalorder %s24, 1
      %p195 = por %p193, %p194
      %p196 = scmp.ne.s32.totalorder %s188, %s191
      %p197 = scmp.eq.s32.totalorder %s24, 0
      %p198 = por %p196, %p197
      %p199 = scmp.ne.s32.totalorder %s188, %s191
      %p200 = scmp.eq.s32.totalorder %s29, 1
      %p201 = por %p199, %p200
      %p202 = scmp.ne.s32.totalorder %s191, %s192
      %p203 = scmp.eq.s32.totalorder %s29, 0
      %p204 = por %p202, %p203
      %p205 = scmp.ne.s32.totalorder %s191, %s192
      %p206 = scmp.eq.s32.totalorder %s30, 1
      %p207 = por %p205, %p206
      %p209 = scmp.ne.s32.totalorder %s192, %s208
      %p210 = scmp.eq.s32.totalorder %s30, 0
      %p211 = por %p209, %p210
      %s212 = ssub.s32 %s31, %s43
      %s213 = ssub.s32 %s32, %s39
      %s214 = sor.u32 %s212, %s213
      %p215 = scmp.eq.s32.totalorder %s214, 0
      %s217 = sadd.s32 %s216, 1
      %s218 = scalar_select %p215, %s216, %s217
      %p221 = pneg %p215
      %p222 = scmp.eq.s32.totalorder %s24, 1
      %p223 = por %p221, %p222
      %p224 = scmp.ne.s32.totalorder %s216, %s219
      %p225 = scmp.eq.s32.totalorder %s24, 0
      %p226 = por %p224, %p225
      %p227 = scmp.ne.s32.totalorder %s216, %s219
      %p228 = scmp.eq.s32.totalorder %s29, 1
      %p229 = por %p227, %p228
      %p230 = scmp.ne.s32.totalorder %s219, %s220
      %p231 = scmp.eq.s32.totalorder %s29, 0
      %p232 = por %p230, %p231
      %p233 = scmp.ne.s32.totalorder %s219, %s220
      %p234 = scmp.eq.s32.totalorder %s30, 1
      %p235 = por %p233, %p234
      %p237 = scmp.ne.s32.totalorder %s220, %s236
      %p238 = scmp.eq.s32.totalorder %s30, 0
      %p239 = por %p237, %p238
      %p240 = scmp.le.s32.totalorder 1, %s24
      %p241 = scmp.lt.s32.totalorder %s24, 3
      %p242 = pnand %p240, %p241
      %p243 = pneg %p242
      // Predicated region
      $region9: #{tpu_custom_call.1} parent=5 // pred_check
        _
      $region10: #{tpu_custom_call.1} parent=5 // pred_check_branch
        %245 = sbr.rel (%p242) target = $region12
      $region11: #{tpu_custom_call.1} parent=5 // pred_region
        %s246 = ssub.s32 %s24, 1
        // Predicated region
        $region13: #{tpu_custom_call.1} parent=11 // pred_check
          %p247 = pneg %p85
        $region14: #{tpu_custom_call.1} parent=11 // pred_check_branch
          %249 = sbr.rel (%p247) target = $region16
        $region15: #{tpu_custom_call.1} parent=11 // pred_region
          _
        $region16: #{tpu_custom_call.1} parent=11 // pred_fallthru
          _
        // Predicated region
        $region17: #{tpu_custom_call.1} parent=11 // pred_check
          %p250 = pneg %p106
        $region18: #{tpu_custom_call.1} parent=11 // pred_check_branch
          %252 = sbr.rel (%p250) target = $region20
        $region19: #{tpu_custom_call.1} parent=11 // pred_region
          _
        $region20: #{tpu_custom_call.1} parent=11 // pred_fallthru
          _
        // Predicated region
        $region21: #{tpu_custom_call.1} parent=11 // pred_check
          %p253 = pneg %p127
        $region22: #{tpu_custom_call.1} parent=11 // pred_check_branch
          %255 = sbr.rel (%p253) target = $region24
        $region23: #{tpu_custom_call.1} parent=11 // pred_region
          %s257 = ssub.s32 256, 256
          %258 = vsyncadd [#allocation6], %s257
          %s259 = sshll.u32 [#allocation5], 4
          %s260 = int_to_ptr.vmem [resolvable:$true] %s259
          %265 = dma.hbm_to_vmem [thread:$0]  %s3, 256, %s260, [#allocation6], 64, 64, 4
        $region24: #{tpu_custom_call.1} parent=11 // pred_fallthru
          _
        // Predicated region
        $region25: #{tpu_custom_call.1} parent=11 // pred_check
          %p266 = pneg %p148
        $region26: #{tpu_custom_call.1} parent=11 // pred_check_branch
          %268 = sbr.rel (%p266) target = $region28
        $region27: #{tpu_custom_call.1} parent=11 // pred_region
          _
        $region28: #{tpu_custom_call.1} parent=11 // pred_fallthru
          _
      $region12: #{tpu_custom_call.1} parent=5 // pred_fallthru
        _
      %p269 = scmp.lt.s32.totalorder %s24, 2
      // Predicated region
      $region29: #{tpu_custom_call.1} parent=5 // pred_check
        %p270 = pneg %p269
      $region30: #{tpu_custom_call.1} parent=5 // pred_check_branch
        %272 = sbr.rel (%p270) target = $region32
      $region31: #{tpu_custom_call.1} parent=5 // pred_region
        // Predicated region
        $region33: #{tpu_custom_call.1} parent=31 // pred_check
          %p273 = pneg %p58
        $region34: #{tpu_custom_call.1} parent=31 // pred_check_branch
          %275 = sbr.rel (%p273) target = $region36
        $region35: #{tpu_custom_call.1} parent=31 // pred_region
          %s276 = sand.u32 %s48, 1
          %s277 = scalar_lea.sflag [#allocation3], %s276
          %s278 = sand.u32 %s48, 1
          %s279 = smul.addr %s278, 4
          %s280 = scalar_lea.vmem [#allocation2], %s279
          %s282 = ssub.s32 64, 64
          %283 = vsyncadd %s277, %s282
          %s284 = sadd.s32 %s32, %s31
          %s285 = smul.addr %s284, 64
          %s286 = scalar_lea.hbm %s0, %s285
          %s288 = sshll.u32 %s280, 4
          %s289 = int_to_ptr.vmem [resolvable:$true] %s288
          %291 = dma.hbm_to_vmem [thread:$0]  %s286, 64, %s289, %s277
        $region36: #{tpu_custom_call.1} parent=31 // pred_fallthru
          _
      $region32: #{tpu_custom_call.1} parent=5 // pred_fallthru
        _
      %p292 = scmp.le.s32.totalorder 1, %s24
      %p293 = scmp.lt.s32.totalorder %s24, 3
      %p294 = pnand %p292, %p293
      %p295 = pneg %p294
      // Predicated region
      $region37: #{tpu_custom_call.1} parent=5 // pred_check
        _
      $region38: #{tpu_custom_call.1} parent=5 // pred_check_branch
        %297 = sbr.rel (%p294) target = $region40
      $region39: #{tpu_custom_call.1} parent=5 // pred_region
        %s298 = ssub.s32 %s24, 1
        %s299 = sand.u32 %s51, 1
        %s300 = scalar_lea.sflag [#allocation3], %s299
        %s301 = sand.u32 %s51, 1
        %s302 = smul.addr %s301, 4
        %s303 = scalar_lea.vmem [#allocation2], %s302
        // Predicated region
        $region41: #{tpu_custom_call.1} parent=39 // pred_check
          %p304 = pneg %p64
        $region42: #{tpu_custom_call.1} parent=39 // pred_check_branch
          %306 = sbr.rel (%p304) target = $region44
        $region43: #{tpu_custom_call.1} parent=39 // pred_region
          %307 = dma.done %s300, 64
        $region44: #{tpu_custom_call.1} parent=39 // pred_fallthru
          _
        // Predicated region
        $region45: #{tpu_custom_call.1} parent=39 // pred_check
          %p308 = pneg %p127
        $region46: #{tpu_custom_call.1} parent=39 // pred_check_branch
          %310 = sbr.rel (%p308) target = $region48
        $region47: #{tpu_custom_call.1} parent=39 // pred_region
          %311 = dma.done [#allocation6], 256
        $region48: #{tpu_custom_call.1} parent=39 // pred_fallthru
          _
        %s312 = sand.u32 %s51, 1
        %s313 = scalar_lea.sflag [#allocation3], %s312
        %s314 = sand.u32 %s51, 1
        %s315 = smul.addr %s314, 4
        %s316 = scalar_lea.vmem [#allocation2], %s315
        %p317 = pneg %p64
        %p318 = pneg %p61
        %p319 = pneg %p85
        %p320 = pneg %p82
        %p321 = pneg %p106
        %p322 = pneg %p103
        %p323 = pneg %p127
        %p324 = pneg %p124
        %p325 = pneg %p148
        %p326 = pneg %p145
        %p327 = pneg %p176
        %p328 = pneg %p173
        %s329 = sand.u32 %s163, 1
        %s330 = scalar_lea.sflag [#allocation4], %s329
        %s331 = sand.u32 %s163, 1
        %s332 = smul.addr %s331, 4
        %s333 = scalar_lea.vmem [#allocation7], %s332
        %p334 = pneg %p204
        %p335 = pneg %p201
        %s336 = sand.u32 %s29, 1
        %s337 = scalar_lea.sflag [#allocation9], %s336
        %s338 = sand.u32 %s191, 1
        %s339 = smul.addr %s338, 4
        %s340 = scalar_lea.vmem [#allocation8], %s339
        %p341 = pneg %p232
        %p342 = pneg %p229
        %s343 = sand.u32 %s29, 1
        %s344 = scalar_lea.sflag [#allocation9], %s343
        %s345 = sand.u32 %s219, 1
        %s346 = smul.addr %s345, 4
        %s347 = scalar_lea.vmem [#allocation10], %s346
        %v349 = vld [vmem:[%s303] sm:$0xf]
        %v350 = vunpack.c.l.bf16 %v349
        %v351 = vld [vmem:[%s1] sm:$0x1]
        %v352 = vld [vmem:[%s2] sm:$0x1]
        %vm353 = vcmask 261120
        %v354 = vsel %vm353, %v350, 0.0
        %355 = vadd.xlane.f32.xlu0 %v354
        %v356 = vpop.xlane.xlu0 %355
        %v357 = vrcp.pop 32.0
        %v358 = vmul.f32 %v356, %v357
        %v359 = vsub.f32 %v350, %v358
        %v360 = vmul.f32 %v359, %v359
        %v361 = vsel %vm353, %v360, 0.0
        %362 = vadd.xlane.f32.xlu0 %v361
        %v363 = vpop.xlane.xlu0 %362
        %v364 = vmul.f32 %v363, %v357
        %v365 = vadd.f32 %v364, 1e-05
        %v366 = vrsqrt.pop %v365
        %v367 = vmul.f32 %v359, %v366
        %v369 = vlaneseq
        %v370 = vshrl.u32 %v369, 7
        %v371 = vsub.s32 0, %v370
        %v372 = vrot.slane %v351, %v371
        %v374 = vmul.f32 %v367, %v372
        %v376 = vlaneseq
        %v377 = vshrl.u32 %v376, 7
        %v378 = vsub.s32 0, %v377
        %v379 = vrot.slane %v352, %v378
        %v381 = vadd.f32 %v374, %v379
        %v382 = vpack.c.bf16 %v381, %v381
        %v383 = vld [vmem:[#allocation5] sm:$0xf]
        %v384 = vld [vmem:[#allocation5 + $0x4] sm:$0xf]
        %v385 = vld [vmem:[#allocation5 + $0x8] sm:$0xf]
        %v386 = vld [vmem:[#allocation5 + $0xc] sm:$0xf]
        %v387 = vld [vmem:[%s4] sm:$0x1]
        %v389 = vlaneseq
        %v390 = vshrl.u32 %v389, 7
        %v391 = vsub.s32 0, %v390
        %v392 = vrot.slane %v387, %v391
        %v398 = vunpack.c.l.b16 %v383
        %v399 = vunpack.c.l.b16 %v384
        %v400 = vunpack.c.l.b16 %v385
        %v401 = vunpack.c.l.b16 %v386
        %v402 = vpack.c.b16 %v399, %v398
        %v403 = vpack.c.b16 %v401, %v400
        %v407 = vsel %vm353, %v382, 0
        %409 = vmatprep.subr.bf16.mxu0 0
        %410 = vmatpush1.bf16.msra.mxu0 %v402
        %411 = vmatprep.subr.bf16.mxu0 0
        %412 = vmatpush1.bf16.msra.mxu0 %v403
        %413 = vmatprep.subr.bf16.mxu0 0
        %414 = vmatpush1.bf16.msra.mxu0 0
        %415 = vmatprep.subr.bf16.mxu0 0
        %416 = vmatpush1.bf16.msra.mxu0 0
        %417 = vmatprep.subr.bf16.mxu0 0
        %418 = vmatpush1.bf16.msra.mxu0 0
        %419 = vmatprep.subr.bf16.mxu0 0
        %420 = vmatpush1.bf16.msra.mxu0 0
        %421 = vmatprep.subr.bf16.mxu0 0
        %422 = vmatpush1.bf16.msra.mxu0 0
        %423 = vmatprep.subr.bf16.mxu0 0
        %424 = vmatpush1.bf16.msra.mxu0 0
        %425 = vmatprep.subr.bf16.mxu0 0
        %426 = vmatpush1.bf16.msra.mxu0 0
        %427 = vmatprep.subr.bf16.mxu0 0
        %428 = vmatpush1.bf16.msra.mxu0 0
        %429 = vmatprep.subr.bf16.mxu0 0
        %430 = vmatpush1.bf16.msra.mxu0 0
        %431 = vmatprep.subr.bf16.mxu0 0
        %432 = vmatpush1.bf16.msra.mxu0 0
        %433 = vmatprep.subr.bf16.mxu0 0
        %434 = vmatpush1.bf16.msra.mxu0 0
        %435 = vmatprep.subr.bf16.mxu0 0
        %436 = vmatpush1.bf16.msra.mxu0 0
        %437 = vmatprep.subr.bf16.mxu0 0
        %438 = vmatpush1.bf16.msra.mxu0 0
        %439 = vmatprep.subr.bf16.mxu0 0
        %440 = vmatpush1.bf16.msra.mxu0 0
        %441 = vmatprep.mubr.bf16.mxu0 0
        %442 = vmatmul.mubr.bf16.gmra.mrb[0].mxu0 %v407
        %v443 = vpop.f32.mrb[0].mxu0
        %v444 = vadd.f32 %v392, %v443
        %v445 = vpop.f32.mrb[0].mxu0
        %v446 = vpop.f32.mrb[0].mxu0
        %v447 = vpop.f32.mrb[0].mxu0
        %448 = vdwg.mxu0
        %v449 = vpack.c.bf16 %v444, %v444
        %vm450 = vcmask 257024
        %451 = vst.msk [vmem:[%s333] sm:$0xf] %vm450, %v449
        %v453 = vunpack.c.l.b16 %v449
        %v454 = vpack.c.b16 %v453, %v453
        %455 = vrot.lane.b32.xlu0 %v454, 96
        %v456 = vpop.permute.xlu0 %455
        %458 = vst.msk [vmem:[%s340] sm:$0xf] %vm450, %v456
        %459 = vrot.lane.b32.xlu0 %v454, 64
        %v460 = vpop.permute.xlu0 %459
        %462 = vst.msk [vmem:[%s347] sm:$0xf] %vm450, %v460
        %s463 = sand.u32 %s163, 1
        %s464 = scalar_lea.sflag [#allocation4], %s463
        %s465 = sand.u32 %s163, 1
        %s466 = smul.addr %s465, 4
        %s467 = scalar_lea.vmem [#allocation7], %s466
        %s468 = sand.u32 %s29, 1
        %s469 = scalar_lea.sflag [#allocation9], %s468
        %s470 = sand.u32 %s191, 1
        %s471 = smul.addr %s470, 4
        %s472 = scalar_lea.vmem [#allocation8], %s471
        %s473 = sand.u32 %s29, 1
        %s474 = scalar_lea.sflag [#allocation9], %s473
        %s475 = sand.u32 %s219, 1
        %s476 = smul.addr %s475, 4
        %s477 = scalar_lea.vmem [#allocation10], %s476
        // Predicated region
        $region49: #{tpu_custom_call.1} parent=39 // pred_check
          %p478 = pneg %p173
        $region50: #{tpu_custom_call.1} parent=39 // pred_check_branch
          %480 = sbr.rel (%p478) target = $region52
        $region51: #{tpu_custom_call.1} parent=39 // pred_region
          %s482 = ssub.s32 64, 64
          %483 = vsyncadd %s464, %s482
          %s484 = sadd.s32 %s34, %s33
          %s485 = smul.addr %s484, 64
          %s486 = scalar_lea.hbm %s5, %s485
          %s488 = sshll.u32 %s467, 4
          %s489 = int_to_ptr.vmem [resolvable:$true] %s488
          %491 = dma.vmem_to_hbm [thread:$0]  %s489, 64, %s486, %s464
        $region52: #{tpu_custom_call.1} parent=39 // pred_fallthru
          _
        // Predicated region
        $region53: #{tpu_custom_call.1} parent=39 // pred_check
          %p492 = pneg %p201
        $region54: #{tpu_custom_call.1} parent=39 // pred_check_branch
          %494 = sbr.rel (%p492) target = $region56
        $region55: #{tpu_custom_call.1} parent=39 // pred_region
          %s496 = ssub.s32 64, 64
          %497 = vsyncadd %s469, %s496
          %s498 = sadd.s32 %s34, %s33
          %s499 = smul.addr %s498, 64
          %s500 = scalar_lea.hbm %s6, %s499
          %s502 = sshll.u32 %s472, 4
          %s503 = int_to_ptr.vmem [resolvable:$true] %s502
          %505 = dma.vmem_to_hbm [thread:$0]  %s503, 64, %s500, %s469
        $region56: #{tpu_custom_call.1} parent=39 // pred_fallthru
          _
        // Predicated region
        $region57: #{tpu_custom_call.1} parent=39 // pred_check
          %p506 = pneg %p229
        $region58: #{tpu_custom_call.1} parent=39 // pred_check_branch
          %508 = sbr.rel (%p506) target = $region60
        $region59: #{tpu_custom_call.1} parent=39 // pred_region
          %s510 = ssub.s32 64, 64
          %511 = vsyncadd %s474, %s510
          %s512 = sadd.s32 %s34, %s33
          %s513 = smul.addr %s512, 64
          %s514 = scalar_lea.hbm %s7, %s513
          %s516 = sshll.u32 %s477, 4
          %s517 = int_to_ptr.vmem [resolvable:$true] %s516
          %519 = dma.vmem_to_hbm [thread:$0]  %s517, 64, %s514, %s474
        $region60: #{tpu_custom_call.1} parent=39 // pred_fallthru
          _
      $region40: #{tpu_custom_call.1} parent=5 // pred_fallthru
        _
      %p520 = scmp.le.s32.totalorder 2, %s24
      // Predicated region
      $region61: #{tpu_custom_call.1} parent=5 // pred_check
        %p521 = pneg %p520
      $region62: #{tpu_custom_call.1} parent=5 // pred_check_branch
        %523 = sbr.rel (%p521) target = $region64
      $region63: #{tpu_custom_call.1} parent=5 // pred_region
        %s524 = ssub.s32 %s24, 2
        // Predicated region
        $region65: #{tpu_custom_call.1} parent=63 // pred_check
          %p525 = pneg %p179
        $region66: #{tpu_custom_call.1} parent=63 // pred_check_branch
          %527 = sbr.rel (%p525) target = $region68
        $region67: #{tpu_custom_call.1} parent=63 // pred_region
          %s528 = sand.u32 %s164, 1
          %s529 = scalar_lea.sflag [#allocation4], %s528
          %s530 = sand.u32 %s164, 1
          %s531 = smul.addr %s530, 4
          %s532 = scalar_lea.vmem [#allocation7], %s531
          %533 = dma.done %s529, 64
        $region68: #{tpu_custom_call.1} parent=63 // pred_fallthru
          _
        // Predicated region
        $region69: #{tpu_custom_call.1} parent=63 // pred_check
          %p534 = pneg %p207
        $region70: #{tpu_custom_call.1} parent=63 // pred_check_branch
          %536 = sbr.rel (%p534) target = $region72
        $region71: #{tpu_custom_call.1} parent=63 // pred_region
          %s537 = sand.u32 %s30, 1
          %s538 = scalar_lea.sflag [#allocation9], %s537
          %s539 = sand.u32 %s192, 1
          %s540 = smul.addr %s539, 4
          %s541 = scalar_lea.vmem [#allocation8], %s540
          %542 = dma.done %s538, 64
        $region72: #{tpu_custom_call.1} parent=63 // pred_fallthru
          _
        // Predicated region
        $region73: #{tpu_custom_call.1} parent=63 // pred_check
          %p543 = pneg %p235
        $region74: #{tpu_custom_call.1} parent=63 // pred_check_branch
          %545 = sbr.rel (%p543) target = $region76
        $region75: #{tpu_custom_call.1} parent=63 // pred_region
          %s546 = sand.u32 %s30, 1
          %s547 = scalar_lea.sflag [#allocation9], %s546
          %s548 = sand.u32 %s220, 1
          %s549 = smul.addr %s548, 4
          %s550 = scalar_lea.vmem [#allocation10], %s549
          %551 = dma.done %s547, 64
        $region76: #{tpu_custom_call.1} parent=63 // pred_fallthru
          _
      $region64: #{tpu_custom_call.1} parent=5 // pred_fallthru
        _
    $region6: #{tpu_custom_call.1} parent=1 // loop_footer
      %s28 = sadd.s32 1, %s24
    $region7: #{tpu_custom_call.1} parent=1 // loop_footer_branch
      %23 = sbr.rel target = $region3
    $region8: #{tpu_custom_call.1} parent=1 // loop_exit
      _
    %552 = vsyncpa [#allocation3], 1
    %s553 = scalar_lea.sflag [#allocation3], 1
    %554 = vsyncpa %s553, 1
    %555 = vsyncpa [#allocation6], 1
    %556 = vsyncpa [#allocation4], 1
    %s557 = scalar_lea.sflag [#allocation4], 1
    %558 = vsyncpa %s557, 1
    %559 = vsyncpa [#allocation9], 1
    %s560 = scalar_lea.sflag [#allocation9], 1
    %561 = vsyncpa %s560, 1

</llo_original>
